<compile_context>
chip_gen: v5e
topology: v5e:2x2
jax: 0.10.0
libtpu: 0.0.40
codegen_flags: <defaults>
</compile_context>

<pallas_src>
import functools

import jax
import jax.numpy as jnp
from jax.experimental import pallas as pl
from jax.experimental.pallas import tpu as pltpu

LN_EPS = 1e-5  # nn.LayerNorm / timm LayerNorm2d default eps


def make_divisible(v, divisor=8, min_value=None, round_limit=0.9):
    min_value = min_value or divisor
    new_v = max(min_value, int(v + divisor / 2) // divisor * divisor)
    if new_v < round_limit * v:
        new_v += divisor
    return new_v


def _pick_hw_tile(hw, max_tile=512):
    """Largest multiple of 128 that divides hw and is <= max_tile (else full)."""
    if hw % 128 != 0:
        return hw  # full-extent block is always legal
    t = max(128, (min(hw, max_tile) // 128) * 128)
    while hw % t != 0:
        t -= 128
    return t


# ----------------------------- shared MLP helper ---------------------------

def _mlp_gate(ctx, w1, b1, g, be, w2, b2):
    """ConvMlp: fc1 -> LayerNorm2d(rd) -> ReLU -> fc2, then sigmoid. ctx:(C,1)."""
    h = jnp.dot(w1, ctx, preferred_element_type=jnp.float32) + b1        # (rd, 1)
    mu = jnp.mean(h, axis=0, keepdims=True)
    var = jnp.mean(jnp.square(h - mu), axis=0, keepdims=True)
    h = (h - mu) * jax.lax.rsqrt(var + LN_EPS)
    h = jnp.maximum(h * g + be, 0.0)
    gate = jnp.dot(w2, h, preferred_element_type=jnp.float32) + b2       # (C, 1)
    return jax.nn.sigmoid(gate)


# ----------------------------- Pallas kernels ------------------------------

def _gc_fused_kernel(x_ref, wa_ref, ba_ref, w1_ref, b1_ref, g_ref, be_ref,
                     w2_ref, b2_ref, o_ref):
    """Single-pass: whole (C, HW) slab of one batch resident in VMEM."""
    xc = x_ref[0]                                                        # (C, HW)
    # conv_attn (1x1, C -> 1): per-pixel logits on the MXU.
    logits = jnp.dot(wa_ref[...], xc,
                     preferred_element_type=jnp.float32) + ba_ref[...]   # (1, HW)
    m = jnp.max(logits, axis=1, keepdims=True)
    p = jnp.exp(logits - m)                                              # (1, HW)
    denom = jnp.sum(p, axis=1, keepdims=True)                            # (1, 1)
    # HW contraction on the MXU: (C, HW) x (1, HW) over HW -> (C, 1)
    ctx = jax.lax.dot_general(xc, p, (((1,), (1,)), ((), ())),
                              preferred_element_type=jnp.float32) / denom
    gate = _mlp_gate(ctx, w1_ref[...], b1_ref[...], g_ref[...], be_ref[...],
                     w2_ref[...], b2_ref[...])                           # (C, 1)
    o_ref[0] = xc * gate                                                 # lane-dense store


def _gc_gate_kernel(x_ref, wa_ref, ba_ref, w1_ref, b1_ref, g_ref, be_ref,
                    w2_ref, b2_ref, gate_ref, m_sc, s_sc, acc_sc):
    """Online-softmax attention pooling over HW tiles + ConvMlp gate.

    x_ref block: (1, C, Thw)   gate_ref block: (1, C, 1)
    Scratch: m_sc (1,1) running max, s_sc (1,1) running exp-sum,
             acc_sc (C,1) running (unnormalized) context.
    """
    j = pl.program_id(1)

    @pl.when(j == 0)
    def _():
        m_sc[...] = jnp.full_like(m_sc, -jnp.inf)
        s_sc[...] = jnp.zeros_like(s_sc)
        acc_sc[...] = jnp.zeros_like(acc_sc)

    xc = x_ref[0]                                                        # (C, Thw)
    logits = jnp.dot(wa_ref[...], xc,
                     preferred_element_type=jnp.float32) + ba_ref[...]   # (1, Thw)

    m_new = jnp.maximum(m_sc[...], jnp.max(logits, axis=1, keepdims=True))
    alpha = jnp.exp(m_sc[...] - m_new)                                   # (1, 1)
    p = jnp.exp(logits - m_new)                                          # (1, Thw)

    s_sc[...] = alpha * s_sc[...] + jnp.sum(p, axis=1, keepdims=True)
    acc_sc[...] = alpha * acc_sc[...] + jax.lax.dot_general(
        xc, p, (((1,), (1,)), ((), ())), preferred_element_type=jnp.float32)
    m_sc[...] = m_new

    @pl.when(j == pl.num_programs(1) - 1)
    def _():
        ctx = acc_sc[...] / s_sc[...]                                    # (C, 1)
        gate_ref[0] = _mlp_gate(ctx, w1_ref[...], b1_ref[...], g_ref[...],
                                be_ref[...], w2_ref[...], b2_ref[...])


def _apply_gate_kernel(x_ref, gate_ref, o_ref):
    # (1, C, Thw) * (1, C, 1) -> (1, C, Thw); lane-dense stores.
    o_ref[0] = x_ref[0] * gate_ref[0]


# ------------------------------- forward -----------------------------------

def global_context_forward(params, x_nchw, *, force_two_pass=False,
                           fused_slab_budget=4 << 20):
    B, C, H, W = x_nchw.shape
    hw = H * W
    xf = x_nchw.reshape(B, C, hw).astype(jnp.float32)

    weights = [params[k] for k in
               ('w_attn', 'b_attn', 'w1t', 'b1', 'ln_g', 'ln_b', 'w2t', 'b2')]

    slab_bytes = C * hw * 4
    if not force_two_pass and slab_bytes <= fused_slab_budget:
        # --- fused single-pass: one HBM read + one HBM write of x ----------
        param_specs = [pl.BlockSpec(p.shape, lambda b: (0, 0)) for p in weights]
        y = pl.pallas_call(
            _gc_fused_kernel,
            out_shape=jax.ShapeDtypeStruct((B, C, hw), jnp.float32),
            grid=(B,),
            in_specs=[pl.BlockSpec((1, C, hw), lambda b: (b, 0, 0))] + param_specs,
            out_specs=pl.BlockSpec((1, C, hw), lambda b: (b, 0, 0)),
            compiler_params=pltpu.CompilerParams(
                dimension_semantics=("parallel",)),
        )(xf, *weights)
        return y.reshape(B, C, H, W)

    # --- phase 1: per-batch (C, 1) gate via HW-tiled online softmax --------
    t1 = _pick_hw_tile(hw, max_tile=512)
    n1 = hw // t1
    param_specs = [pl.BlockSpec(p.shape, lambda b, j: (0, 0)) for p in weights]
    gate = pl.pallas_call(
        _gc_gate_kernel,
        out_shape=jax.ShapeDtypeStruct((B, C, 1), jnp.float32),
        grid=(B, n1),
        in_specs=[pl.BlockSpec((1, C, t1), lambda b, j: (b, 0, j))] + param_specs,
        out_specs=pl.BlockSpec((1, C, 1), lambda b, j: (b, 0, 0)),
        scratch_shapes=[pltpu.VMEM((1, 1), jnp.float32),
                        pltpu.VMEM((1, 1), jnp.float32),
                        pltpu.VMEM((C, 1), jnp.float32)],
        compiler_params=pltpu.CompilerParams(
            dimension_semantics=("parallel", "arbitrary")),
    )(xf, *weights)

    # --- phase 2: gated output, large lane-dense tiles ----------------------
    t2 = _pick_hw_tile(hw, max_tile=2048)
    n2 = hw // t2
    y = pl.pallas_call(
        _apply_gate_kernel,
        out_shape=jax.ShapeDtypeStruct((B, C, hw), jnp.float32),
        grid=(B, n2),
        in_specs=[pl.BlockSpec((1, C, t2), lambda b, j: (b, 0, j)),
                  pl.BlockSpec((1, C, 1), lambda b, j: (b, 0, 0))],
        out_specs=pl.BlockSpec((1, C, t2), lambda b, j: (b, 0, j)),
        compiler_params=pltpu.CompilerParams(
            dimension_semantics=("parallel", "parallel")),
    )(xf, gate)

    return y.reshape(B, C, H, W)


# --------------------------- deterministic init -----------------------------

def init_global_context(key, channels, rd_ratio=1.0 / 8, rd_divisor=1):
    rd = make_divisible(channels * rd_ratio, rd_divisor, round_limit=0.0)
    ks = jax.random.split(key, 8)
    return {
        # conv_attn (1x1, C->1): kaiming_normal fan_in / relu
        'w_attn': jax.random.normal(ks[0], (1, channels), jnp.float32)
                  * (2.0 / channels) ** 0.5,
        'b_attn': 0.01 * jax.random.normal(ks[1], (1, 1), jnp.float32),
        # ConvMlp fc1 (C->rd), LayerNorm2d(rd), fc2 (rd->C) -- stored transposed
        # so the kernel works on column vectors (C,1)/(rd,1).
        'w1t': jax.random.normal(ks[2], (rd, channels), jnp.float32)
               / jnp.sqrt(channels),
        'b1': 0.01 * jax.random.normal(ks[3], (rd, 1), jnp.float32),
        'ln_g': jax.random.uniform(ks[4], (rd, 1), jnp.float32, 0.5, 1.5),
        'ln_b': 0.01 * jax.random.normal(ks[5], (rd, 1), jnp.float32),
        'w2t': jax.random.normal(ks[6], (channels, rd), jnp.float32)
               / jnp.sqrt(rd),
        'b2': 0.01 * jax.random.normal(ks[7], (channels, 1), jnp.float32),
        'rd': rd,
    }


# --------------------------- pure-JAX reference -----------------------------

def reference_forward(params, x):
    B, C, H, W = x.shape
    xf = x.reshape(B, C, H * W).astype(jnp.float32)
    logits = jnp.einsum('oc,bcp->bp', params['w_attn'], xf) + params['b_attn'][0, 0]
    attn = jax.nn.softmax(logits, axis=-1)                               # (B, HW)
    ctx = jnp.einsum('bcp,bp->bc', xf, attn)                             # (B, C)
    h = ctx @ params['w1t'].T + params['b1'][:, 0]                       # (B, rd)
    mu = h.mean(-1, keepdims=True)
    var = ((h - mu) ** 2).mean(-1, keepdims=True)
    h = (h - mu) / jnp.sqrt(var + LN_EPS) * params['ln_g'][:, 0] + params['ln_b'][:, 0]
    h = jnp.maximum(h, 0.0)
    gate = jax.nn.sigmoid(h @ params['w2t'].T + params['b2'][:, 0])      # (B, C)
    return x.astype(jnp.float32) * gate[:, :, None, None]


# ----------------------------------- main -----------------------------------

if __name__ == "__main__":
    key = jax.random.PRNGKey(0)
    kp, kx = jax.random.split(key)

    # (B, C, H, W): both configs take the fused single-pass path.
    configs = [(2, 64, 16, 16), (2, 64, 32, 32)]
    for i, (B, C, H, W) in enumerate(configs):
        params = init_global_context(jax.random.fold_in(kp, i), C)
        x = jax.random.normal(jax.random.fold_in(kx, i), (B, C, H, W), jnp.float32)
        ref = reference_forward(params, x)

        fwd = jax.jit(functools.partial(global_context_forward, params))
        out = jax.block_until_ready(fwd(x))
        assert out.shape == (B, C, H, W), out.shape
        assert bool(jnp.all(jnp.isfinite(out)))
        err = float(jnp.max(jnp.abs(out - ref)))
        assert bool(jnp.allclose(out, ref, rtol=1e-3, atol=1e-3)), err

        # Also exercise the two-pass (online-softmax) path on the larger map
        # (HW=1024, tile=512 -> 2 reduction steps per batch).
        if i == 1:
            fwd2 = jax.jit(functools.partial(global_context_forward, params,
                                             force_two_pass=True))
            out2 = jax.block_until_ready(fwd2(x))
            err2 = float(jnp.max(jnp.abs(out2 - ref)))
            assert bool(jnp.allclose(out2, ref, rtol=1e-3, atol=1e-3)), err2

    print("KERNEL_OK")
</pallas_src>

<mosaic_0001>
module attributes {stable_mosaic.version = 11 : i64} {
  func.func @_gc_fused_kernel(%arg0: i32, %arg1: memref<1x64x256xf32, #tpu.memory_space<vmem>>, %arg2: memref<1x64xf32, #tpu.memory_space<vmem>>, %arg3: memref<1x1xf32, #tpu.memory_space<vmem>>, %arg4: memref<8x64xf32, #tpu.memory_space<vmem>>, %arg5: memref<8x1xf32, #tpu.memory_space<vmem>>, %arg6: memref<8x1xf32, #tpu.memory_space<vmem>>, %arg7: memref<8x1xf32, #tpu.memory_space<vmem>>, %arg8: memref<64x8xf32, #tpu.memory_space<vmem>>, %arg9: memref<64x1xf32, #tpu.memory_space<vmem>>, %arg10: memref<1x64x256xf32, #tpu.memory_space<vmem>>) attributes {dimension_semantics = [#tpu.dimension_semantics<parallel>], iteration_bounds = array<i64: 2>, scalar_prefetch = 0 : i64, scratch_operands = 0 : i64, tpu.core_type = #tpu.core_type<tc>, window_params = [{transform_indices = @transform_0, window_bounds = array<i64: 1, 64, 256>}, {pipeline_mode = #tpu.pipeline_mode<synchronous>, transform_indices = @transform_1, window_bounds = array<i64: 1, 64>}, {pipeline_mode = #tpu.pipeline_mode<synchronous>, transform_indices = @transform_2, window_bounds = array<i64: 1, 1>}, {pipeline_mode = #tpu.pipeline_mode<synchronous>, transform_indices = @transform_3, window_bounds = array<i64: 8, 64>}, {pipeline_mode = #tpu.pipeline_mode<synchronous>, transform_indices = @transform_4, window_bounds = array<i64: 8, 1>}, {pipeline_mode = #tpu.pipeline_mode<synchronous>, transform_indices = @transform_5, window_bounds = array<i64: 8, 1>}, {pipeline_mode = #tpu.pipeline_mode<synchronous>, transform_indices = @transform_6, window_bounds = array<i64: 8, 1>}, {pipeline_mode = #tpu.pipeline_mode<synchronous>, transform_indices = @transform_7, window_bounds = array<i64: 64, 8>}, {pipeline_mode = #tpu.pipeline_mode<synchronous>, transform_indices = @transform_8, window_bounds = array<i64: 64, 1>}, {transform_indices = @transform_9, window_bounds = array<i64: 1, 64, 256>}]} {
    %c0 = arith.constant 0 : index
    %c0_0 = arith.constant 0 : index
    %c0_1 = arith.constant 0 : index
    %0 = vector.load %arg1[%c0, %c0_0, %c0_1] : memref<1x64x256xf32, #tpu.memory_space<vmem>>, vector<1x64x256xf32>
    %1 = vector.shape_cast %0 : vector<1x64x256xf32> to vector<64x256xf32>
    %c0_2 = arith.constant 0 : index
    %c0_3 = arith.constant 0 : index
    %2 = vector.load %arg2[%c0_2, %c0_3] : memref<1x64xf32, #tpu.memory_space<vmem>>, vector<1x64xf32>
    %cst = arith.constant dense<0.000000e+00> : vector<1x256xf32>
    %3 = tpu.matmul %2, %1, %cst {dimension_numbers = #tpu.dot_dimension_numbers<[1], [0], [0], [1], [0, 0, 1, 1], [], []>} : vector<1x64xf32>, vector<64x256xf32>, vector<1x256xf32> -> vector<1x256xf32>
    %c0_4 = arith.constant 0 : index
    %c0_5 = arith.constant 0 : index
    %4 = vector.load %arg3[%c0_4, %c0_5] : memref<1x1xf32, #tpu.memory_space<vmem>>, vector<1x1xf32>
    %5 = vector.broadcast %4 : vector<1x1xf32> to vector<1x256xf32>
    %6 = arith.addf %3, %5 : vector<1x256xf32>
    %cst_6 = arith.constant dense<0xFF800000> : vector<1xf32>
    %7 = vector.multi_reduction <maximumf>, %6, %cst_6 [1] : vector<1x256xf32> to vector<1xf32>
    %8 = vector.shape_cast %7 : vector<1xf32> to vector<1x1xf32>
    %9 = vector.broadcast %8 : vector<1x1xf32> to vector<1x256xf32>
    %10 = arith.subf %6, %9 : vector<1x256xf32>
    %11 = math.exp %10 : vector<1x256xf32>
    %cst_7 = arith.constant dense<0.000000e+00> : vector<1xf32>
    %12 = vector.multi_reduction <add>, %11, %cst_7 [1] : vector<1x256xf32> to vector<1xf32>
    %13 = vector.shape_cast %12 : vector<1xf32> to vector<1x1xf32>
    %cst_8 = arith.constant dense<0.000000e+00> : vector<64x1xf32>
    %14 = tpu.matmul %1, %11, %cst_8 {dimension_numbers = #tpu.dot_dimension_numbers<[1], [1], [0], [0], [0, 0, 1, 0], [], []>} : vector<64x256xf32>, vector<1x256xf32>, vector<64x1xf32> -> vector<64x1xf32>
    %15 = vector.broadcast %13 : vector<1x1xf32> to vector<64x1xf32>
    %16 = arith.divf %14, %15 : vector<64x1xf32>
    %c0_9 = arith.constant 0 : index
    %c0_10 = arith.constant 0 : index
    %17 = vector.load %arg4[%c0_9, %c0_10] : memref<8x64xf32, #tpu.memory_space<vmem>>, vector<8x64xf32>
    %c0_11 = arith.constant 0 : index
    %c0_12 = arith.constant 0 : index
    %18 = vector.load %arg5[%c0_11, %c0_12] : memref<8x1xf32, #tpu.memory_space<vmem>>, vector<8x1xf32>
    %c0_13 = arith.constant 0 : index
    %c0_14 = arith.constant 0 : index
    %19 = vector.load %arg6[%c0_13, %c0_14] : memref<8x1xf32, #tpu.memory_space<vmem>>, vector<8x1xf32>
    %c0_15 = arith.constant 0 : index
    %c0_16 = arith.constant 0 : index
    %20 = vector.load %arg7[%c0_15, %c0_16] : memref<8x1xf32, #tpu.memory_space<vmem>>, vector<8x1xf32>
    %c0_17 = arith.constant 0 : index
    %c0_18 = arith.constant 0 : index
    %21 = vector.load %arg8[%c0_17, %c0_18] : memref<64x8xf32, #tpu.memory_space<vmem>>, vector<64x8xf32>
    %c0_19 = arith.constant 0 : index
    %c0_20 = arith.constant 0 : index
    %22 = vector.load %arg9[%c0_19, %c0_20] : memref<64x1xf32, #tpu.memory_space<vmem>>, vector<64x1xf32>
    %cst_21 = arith.constant dense<0.000000e+00> : vector<8x1xf32>
    %23 = tpu.matmul %17, %16, %cst_21 {dimension_numbers = #tpu.dot_dimension_numbers<[1], [0], [0], [1], [0, 0, 1, 1], [], []>} : vector<8x64xf32>, vector<64x1xf32>, vector<8x1xf32> -> vector<8x1xf32>
    %24 = arith.addf %23, %18 : vector<8x1xf32>
    %cst_22 = arith.constant dense<0.000000e+00> : vector<1xf32>
    %25 = vector.multi_reduction <add>, %24, %cst_22 [0] : vector<8x1xf32> to vector<1xf32>
    %26 = vector.shape_cast %25 : vector<1xf32> to vector<1x1xf32>
    %cst_23 = arith.constant 8.000000e+00 : f32
    %27 = vector.broadcast %cst_23 : f32 to vector<1x1xf32>
    %28 = arith.divf %26, %27 : vector<1x1xf32>
    %29 = vector.broadcast %28 : vector<1x1xf32> to vector<8x1xf32>
    %30 = arith.subf %24, %29 : vector<8x1xf32>
    %31 = arith.mulf %30, %30 : vector<8x1xf32>
    %cst_24 = arith.constant dense<0.000000e+00> : vector<1xf32>
    %32 = vector.multi_reduction <add>, %31, %cst_24 [0] : vector<8x1xf32> to vector<1xf32>
    %33 = vector.shape_cast %32 : vector<1xf32> to vector<1x1xf32>
    %cst_25 = arith.constant 8.000000e+00 : f32
    %34 = vector.broadcast %cst_25 : f32 to vector<1x1xf32>
    %35 = arith.divf %33, %34 : vector<1x1xf32>
    %36 = vector.broadcast %28 : vector<1x1xf32> to vector<8x1xf32>
    %37 = arith.subf %24, %36 : vector<8x1xf32>
    %cst_26 = arith.constant 9.99999974E-6 : f32
    %38 = vector.broadcast %cst_26 : f32 to vector<1x1xf32>
    %39 = arith.addf %35, %38 : vector<1x1xf32>
    %40 = math.rsqrt %39 : vector<1x1xf32>
    %41 = vector.broadcast %40 : vector<1x1xf32> to vector<8x1xf32>
    %42 = arith.mulf %37, %41 : vector<8x1xf32>
    %43 = arith.mulf %42, %19 : vector<8x1xf32>
    %44 = arith.addf %43, %20 : vector<8x1xf32>
    %cst_27 = arith.constant 0.000000e+00 : f32
    %45 = vector.broadcast %cst_27 : f32 to vector<8x1xf32>
    %46 = arith.maximumf %44, %45 : vector<8x1xf32>
    %cst_28 = arith.constant dense<0.000000e+00> : vector<64x1xf32>
    %47 = tpu.matmul %21, %46, %cst_28 {dimension_numbers = #tpu.dot_dimension_numbers<[1], [0], [0], [1], [0, 0, 1, 1], [], []>} : vector<64x8xf32>, vector<8x1xf32>, vector<64x1xf32> -> vector<64x1xf32>
    %48 = arith.addf %47, %22 : vector<64x1xf32>
    %49 = arith.negf %48 : vector<64x1xf32>
    %50 = math.exp %49 : vector<64x1xf32>
    %cst_29 = arith.constant 1.000000e+00 : f32
    %51 = vector.broadcast %cst_29 : f32 to vector<64x1xf32>
    %52 = arith.addf %51, %50 : vector<64x1xf32>
    %53 = arith.divf %51, %52 : vector<64x1xf32>
    %54 = vector.broadcast %53 : vector<64x1xf32> to vector<64x256xf32>
    %55 = arith.mulf %1, %54 : vector<64x256xf32>
    %c0_30 = arith.constant 0 : index
    %c0_31 = arith.constant 0 : index
    %c0_32 = arith.constant 0 : index
    %56 = vector.load %arg10[%c0_30, %c0_31, %c0_32] : memref<1x64x256xf32, #tpu.memory_space<vmem>>, vector<1x64x256xf32>
    %57 = vector.shape_cast %56 : vector<1x64x256xf32> to vector<64x256xf32>
    %58 = vector.shape_cast %55 : vector<64x256xf32> to vector<1x64x256xf32>
    tpu.vector_store %arg10[%c0_30, %c0_31, %c0_32], %58 {strides = array<i32>} : memref<1x64x256xf32, #tpu.memory_space<vmem>>, vector<1x64x256xf32>,
    return
  }
  func.func @transform_0(%arg0: i32) -> (i32, i32, i32) {
    %c0_i32 = arith.constant 0 : i32
    %c0_i32_0 = arith.constant 0 : i32
    %c0_i32_1 = arith.constant 0 : i32
    return %arg0, %c0_i32, %c0_i32_0 : i32, i32, i32
  }
  func.func @transform_1(%arg0: i32) -> (i32, i32) {
    %c0_i32 = arith.constant 0 : i32
    %c0_i32_0 = arith.constant 0 : i32
    %c0_i32_1 = arith.constant 0 : i32
    return %c0_i32, %c0_i32_0 : i32, i32
  }
  func.func @transform_2(%arg0: i32) -> (i32, i32) {
    %c0_i32 = arith.constant 0 : i32
    %c0_i32_0 = arith.constant 0 : i32
    %c0_i32_1 = arith.constant 0 : i32
    return %c0_i32, %c0_i32_0 : i32, i32
  }
  func.func @transform_3(%arg0: i32) -> (i32, i32) {
    %c0_i32 = arith.constant 0 : i32
    %c0_i32_0 = arith.constant 0 : i32
    %c0_i32_1 = arith.constant 0 : i32
    return %c0_i32, %c0_i32_0 : i32, i32
  }
  func.func @transform_4(%arg0: i32) -> (i32, i32) {
    %c0_i32 = arith.constant 0 : i32
    %c0_i32_0 = arith.constant 0 : i32
    %c0_i32_1 = arith.constant 0 : i32
    return %c0_i32, %c0_i32_0 : i32, i32
  }
  func.func @transform_5(%arg0: i32) -> (i32, i32) {
    %c0_i32 = arith.constant 0 : i32
    %c0_i32_0 = arith.constant 0 : i32
    %c0_i32_1 = arith.constant 0 : i32
    return %c0_i32, %c0_i32_0 : i32, i32
  }
  func.func @transform_6(%arg0: i32) -> (i32, i32) {
    %c0_i32 = arith.constant 0 : i32
    %c0_i32_0 = arith.constant 0 : i32
    %c0_i32_1 = arith.constant 0 : i32
    return %c0_i32, %c0_i32_0 : i32, i32
  }
  func.func @transform_7(%arg0: i32) -> (i32, i32) {
    %c0_i32 = arith.constant 0 : i32
    %c0_i32_0 = arith.constant 0 : i32
    %c0_i32_1 = arith.constant 0 : i32
    return %c0_i32, %c0_i32_0 : i32, i32
  }
  func.func @transform_8(%arg0: i32) -> (i32, i32) {
    %c0_i32 = arith.constant 0 : i32
    %c0_i32_0 = arith.constant 0 : i32
    %c0_i32_1 = arith.constant 0 : i32
    return %c0_i32, %c0_i32_0 : i32, i32
  }
  func.func @transform_9(%arg0: i32) -> (i32, i32, i32) {
    %c0_i32 = arith.constant 0 : i32
    %c0_i32_0 = arith.constant 0 : i32
    %c0_i32_1 = arith.constant 0 : i32
    return %arg0, %c0_i32, %c0_i32_0 : i32, i32, i32
  }
}

</mosaic_0001>

<llo_original>
// kernel: global_context_forward.1
$region0: #{global_context_forward.1}
  #allocation0 [shape = 'u32[]', space=smem, size = 0x4, offset = 0x4, fixed_abs, tag = 'smem constant byte address 0x4 - core index']
  #allocation1 [shape = 'u32[72,128]{1,0:T(1,128)}', space=vmem, size = 0x9000, scoped, tag = 'internal scratch']
  #allocation2 [shape = 'f32[1,1]{1,0:T(1,128)S(1)}', space=vmem, size = 0x200, scoped, tag = 'scoped memory for global_context_forward.1']
  %s0 = inlined_call_operand.vmem [shape: f32[2,64,256], index: 0, kind: input, shape index: {}]
  %s1 = inlined_call_operand.vmem [shape: f32[1,64], index: 1, kind: input, shape index: {}]
  %s2 = inlined_call_operand.<no memory space> [shape: f32[1,1], index: 2, kind: input, shape index: {}]
  %s3 = inlined_call_operand.vmem [shape: f32[8,64], index: 3, kind: input, shape index: {}]
  %s4 = inlined_call_operand.vmem [shape: f32[8,1], index: 4, kind: input, shape index: {}]
  %s5 = inlined_call_operand.vmem [shape: f32[8,1], index: 5, kind: input, shape index: {}]
  %s6 = inlined_call_operand.vmem [shape: f32[8,1], index: 6, kind: input, shape index: {}]
  %s7 = inlined_call_operand.vmem [shape: f32[64,8], index: 7, kind: input, shape index: {}]
  %s8 = inlined_call_operand.vmem [shape: f32[64,1], index: 8, kind: input, shape index: {}]
  %s9 = inlined_call_operand.vmem [shape: f32[2,64,256], index: 9, kind: output, shape index: {}]
  %s10 = sld [smem:[#allocation0]]
  $region69: #{global_context_forward.1} parent=0
    _
  %s12 = ssub.s32 1, %s10
  %s13 = scalar_select 0, %s12, %s10
  %v14 = vstv %s2
  %15 = vst [vmem:[#allocation2] sm:$0x1] %v14
  loop: start=0, step=1, limit=4
  $region2: #{global_context_forward.1} parent=0 // loop_pre_header
    _
  $region3: #{global_context_forward.1} parent=0 // loop_header
    %s17 = sphi 0, %s21
    %p18 = scmp.ge.s32.totalorder %s17, 4
    %s27 = sphi 0, %s29
    %s30 = sphi 0, %s27
    %s31 = sphi 0, %s30
    %s47 = sphi 0, %s31
    %s51 = sphi 0, %s51
    %s53 = sphi 0, %s51
    %s54 = sphi 0, %s53
    %s68 = sphi 0, %s54
    %s72 = sphi 0, %s72
    %s74 = sphi 0, %s72
    %s75 = sphi 0, %s74
    %s89 = sphi 0, %s75
    %s93 = sphi 0, %s93
    %s95 = sphi 0, %s93
    %s96 = sphi 0, %s95
    %s110 = sphi 0, %s96
    %s114 = sphi 0, %s114
    %s116 = sphi 0, %s114
    %s117 = sphi 0, %s116
    %s131 = sphi 0, %s117
    %s135 = sphi 0, %s135
    %s137 = sphi 0, %s135
    %s138 = sphi 0, %s137
    %s152 = sphi 0, %s138
    %s156 = sphi 0, %s156
    %s158 = sphi 0, %s156
    %s159 = sphi 0, %s158
    %s173 = sphi 0, %s159
    %s177 = sphi 0, %s177
    %s179 = sphi 0, %s177
    %s180 = sphi 0, %s179
    %s194 = sphi 0, %s180
    %s198 = sphi 0, %s198
    %s200 = sphi 0, %s198
    %s201 = sphi 0, %s200
    %s215 = sphi 0, %s201
    %s221 = sphi 0, %s223
    %s224 = sphi 0, %s221
    %s225 = sphi 0, %s224
    %s241 = sphi 0, %s225
  $region4: #{global_context_forward.1} parent=0 // loop_header_branch
    %20 = sbr.rel (%p18) target = $region8
  $region5: #{global_context_forward.1} parent=0 // loop_body
    %s22 = ssub.s32 %s17, 1
    %s23 = ssub.s32 %s17, 2
    %s24 = sadd.s32 %s17, 1
    %s25 = ssub.s32 %s17, %s24
    %p26 = scmp.eq.s32.totalorder %s25, 0
    %s28 = sadd.s32 %s27, 1
    %s29 = scalar_select %p26, %s27, %s28
    %p32 = pneg %p26
    %p33 = scmp.eq.s32.totalorder %s17, 1
    %p34 = por %p32, %p33
    %p35 = scmp.ne.s32.totalorder %s27, %s30
    %p36 = scmp.eq.s32.totalorder %s17, 0
    %p37 = por %p35, %p36
    %p38 = scmp.ne.s32.totalorder %s27, %s30
    %p39 = scmp.eq.s32.totalorder %s22, 1
    %p40 = por %p38, %p39
    %p41 = scmp.ne.s32.totalorder %s30, %s31
    %p42 = scmp.eq.s32.totalorder %s22, 0
    %p43 = por %p41, %p42
    %p44 = scmp.ne.s32.totalorder %s30, %s31
    %p45 = scmp.eq.s32.totalorder %s23, 1
    %p46 = por %p44, %p45
    %p48 = scmp.ne.s32.totalorder %s31, %s47
    %p49 = scmp.eq.s32.totalorder %s23, 0
    %p50 = por %p48, %p49
    %s52 = sadd.s32 %s51, 1
    %p55 = scmp.eq.s32.totalorder %s17, 1
    %p56 = scmp.ne.s32.totalorder %s51, %s53
    %p57 = scmp.eq.s32.totalorder %s17, 0
    %p58 = por %p56, %p57
    %p59 = scmp.ne.s32.totalorder %s51, %s53
    %p60 = scmp.eq.s32.totalorder %s22, 1
    %p61 = por %p59, %p60
    %p62 = scmp.ne.s32.totalorder %s53, %s54
    %p63 = scmp.eq.s32.totalorder %s22, 0
    %p64 = por %p62, %p63
    %p65 = scmp.ne.s32.totalorder %s53, %s54
    %p66 = scmp.eq.s32.totalorder %s23, 1
    %p67 = por %p65, %p66
    %p69 = scmp.ne.s32.totalorder %s54, %s68
    %p70 = scmp.eq.s32.totalorder %s23, 0
    %p71 = por %p69, %p70
    %s73 = sadd.s32 %s72, 1
    %p76 = scmp.eq.s32.totalorder %s17, 1
    %p77 = scmp.ne.s32.totalorder %s72, %s74
    %p78 = scmp.eq.s32.totalorder %s17, 0
    %p79 = por %p77, %p78
    %p80 = scmp.ne.s32.totalorder %s72, %s74
    %p81 = scmp.eq.s32.totalorder %s22, 1
    %p82 = por %p80, %p81
    %p83 = scmp.ne.s32.totalorder %s74, %s75
    %p84 = scmp.eq.s32.totalorder %s22, 0
    %p85 = por %p83, %p84
    %p86 = scmp.ne.s32.totalorder %s74, %s75
    %p87 = scmp.eq.s32.totalorder %s23, 1
    %p88 = por %p86, %p87
    %p90 = scmp.ne.s32.totalorder %s75, %s89
    %p91 = scmp.eq.s32.totalorder %s23, 0
    %p92 = por %p90, %p91
    %s94 = sadd.s32 %s93, 1
    %p97 = scmp.eq.s32.totalorder %s17, 1
    %p98 = scmp.ne.s32.totalorder %s93, %s95
    %p99 = scmp.eq.s32.totalorder %s17, 0
    %p100 = por %p98, %p99
    %p101 = scmp.ne.s32.totalorder %s93, %s95
    %p102 = scmp.eq.s32.totalorder %s22, 1
    %p103 = por %p101, %p102
    %p104 = scmp.ne.s32.totalorder %s95, %s96
    %p105 = scmp.eq.s32.totalorder %s22, 0
    %p106 = por %p104, %p105
    %p107 = scmp.ne.s32.totalorder %s95, %s96
    %p108 = scmp.eq.s32.totalorder %s23, 1
    %p109 = por %p107, %p108
    %p111 = scmp.ne.s32.totalorder %s96, %s110
    %p112 = scmp.eq.s32.totalorder %s23, 0
    %p113 = por %p111, %p112
    %s115 = sadd.s32 %s114, 1
    %p118 = scmp.eq.s32.totalorder %s17, 1
    %p119 = scmp.ne.s32.totalorder %s114, %s116
    %p120 = scmp.eq.s32.totalorder %s17, 0
    %p121 = por %p119, %p120
    %p122 = scmp.ne.s32.totalorder %s114, %s116
    %p123 = scmp.eq.s32.totalorder %s22, 1
    %p124 = por %p122, %p123
    %p125 = scmp.ne.s32.totalorder %s116, %s117
    %p126 = scmp.eq.s32.totalorder %s22, 0
    %p127 = por %p125, %p126
    %p128 = scmp.ne.s32.totalorder %s116, %s117
    %p129 = scmp.eq.s32.totalorder %s23, 1
    %p130 = por %p128, %p129
    %p132 = scmp.ne.s32.totalorder %s117, %s131
    %p133 = scmp.eq.s32.totalorder %s23, 0
    %p134 = por %p132, %p133
    %s136 = sadd.s32 %s135, 1
    %p139 = scmp.eq.s32.totalorder %s17, 1
    %p140 = scmp.ne.s32.totalorder %s135, %s137
    %p141 = scmp.eq.s32.totalorder %s17, 0
    %p142 = por %p140, %p141
    %p143 = scmp.ne.s32.totalorder %s135, %s137
    %p144 = scmp.eq.s32.totalorder %s22, 1
    %p145 = por %p143, %p144
    %p146 = scmp.ne.s32.totalorder %s137, %s138
    %p147 = scmp.eq.s32.totalorder %s22, 0
    %p148 = por %p146, %p147
    %p149 = scmp.ne.s32.totalorder %s137, %s138
    %p150 = scmp.eq.s32.totalorder %s23, 1
    %p151 = por %p149, %p150
    %p153 = scmp.ne.s32.totalorder %s138, %s152
    %p154 = scmp.eq.s32.totalorder %s23, 0
    %p155 = por %p153, %p154
    %s157 = sadd.s32 %s156, 1
    %p160 = scmp.eq.s32.totalorder %s17, 1
    %p161 = scmp.ne.s32.totalorder %s156, %s158
    %p162 = scmp.eq.s32.totalorder %s17, 0
    %p163 = por %p161, %p162
    %p164 = scmp.ne.s32.totalorder %s156, %s158
    %p165 = scmp.eq.s32.totalorder %s22, 1
    %p166 = por %p164, %p165
    %p167 = scmp.ne.s32.totalorder %s158, %s159
    %p168 = scmp.eq.s32.totalorder %s22, 0
    %p169 = por %p167, %p168
    %p170 = scmp.ne.s32.totalorder %s158, %s159
    %p171 = scmp.eq.s32.totalorder %s23, 1
    %p172 = por %p170, %p171
    %p174 = scmp.ne.s32.totalorder %s159, %s173
    %p175 = scmp.eq.s32.totalorder %s23, 0
    %p176 = por %p174, %p175
    %s178 = sadd.s32 %s177, 1
    %p181 = scmp.eq.s32.totalorder %s17, 1
    %p182 = scmp.ne.s32.totalorder %s177, %s179
    %p183 = scmp.eq.s32.totalorder %s17, 0
    %p184 = por %p182, %p183
    %p185 = scmp.ne.s32.totalorder %s177, %s179
    %p186 = scmp.eq.s32.totalorder %s22, 1
    %p187 = por %p185, %p186
    %p188 = scmp.ne.s32.totalorder %s179, %s180
    %p189 = scmp.eq.s32.totalorder %s22, 0
    %p190 = por %p188, %p189
    %p191 = scmp.ne.s32.totalorder %s179, %s180
    %p192 = scmp.eq.s32.totalorder %s23, 1
    %p193 = por %p191, %p192
    %p195 = scmp.ne.s32.totalorder %s180, %s194
    %p196 = scmp.eq.s32.totalorder %s23, 0
    %p197 = por %p195, %p196
    %s199 = sadd.s32 %s198, 1
    %p202 = scmp.eq.s32.totalorder %s17, 1
    %p203 = scmp.ne.s32.totalorder %s198, %s200
    %p204 = scmp.eq.s32.totalorder %s17, 0
    %p205 = por %p203, %p204
    %p206 = scmp.ne.s32.totalorder %s198, %s200
    %p207 = scmp.eq.s32.totalorder %s22, 1
    %p208 = por %p206, %p207
    %p209 = scmp.ne.s32.totalorder %s200, %s201
    %p210 = scmp.eq.s32.totalorder %s22, 0
    %p211 = por %p209, %p210
    %p212 = scmp.ne.s32.totalorder %s200, %s201
    %p213 = scmp.eq.s32.totalorder %s23, 1
    %p214 = por %p212, %p213
    %p216 = scmp.ne.s32.totalorder %s201, %s215
    %p217 = scmp.eq.s32.totalorder %s23, 0
    %p218 = por %p216, %p217
    %s219 = ssub.s32 %s17, %s24
    %p220 = scmp.eq.s32.totalorder %s219, 0
    %s222 = sadd.s32 %s221, 1
    %s223 = scalar_select %p220, %s221, %s222
    %p226 = pneg %p220
    %p227 = scmp.eq.s32.totalorder %s17, 1
    %p228 = por %p226, %p227
    %p229 = scmp.ne.s32.totalorder %s221, %s224
    %p230 = scmp.eq.s32.totalorder %s17, 0
    %p231 = por %p229, %p230
    %p232 = scmp.ne.s32.totalorder %s221, %s224
    %p233 = scmp.eq.s32.totalorder %s22, 1
    %p234 = por %p232, %p233
    %p235 = scmp.ne.s32.totalorder %s224, %s225
    %p236 = scmp.eq.s32.totalorder %s22, 0
    %p237 = por %p235, %p236
    %p238 = scmp.ne.s32.totalorder %s224, %s225
    %p239 = scmp.eq.s32.totalorder %s23, 1
    %p240 = por %p238, %p239
    %p242 = scmp.ne.s32.totalorder %s225, %s241
    %p243 = scmp.eq.s32.totalorder %s23, 0
    %p244 = por %p242, %p243
    %p245 = scmp.le.s32.totalorder 1, %s17
    %p246 = scmp.lt.s32.totalorder %s17, 3
    %p247 = pnand %p245, %p246
    %p248 = pneg %p247
    // Predicated region
    $region9: #{global_context_forward.1} parent=5 // pred_check
      _
    $region10: #{global_context_forward.1} parent=5 // pred_check_branch
      %250 = sbr.rel (%p247) target = $region12
    $region11: #{global_context_forward.1} parent=5 // pred_region
      %s251 = ssub.s32 %s17, 1
      // Predicated region
      $region13: #{global_context_forward.1} parent=11 // pred_check
        %p252 = pneg %p64
      $region14: #{global_context_forward.1} parent=11 // pred_check_branch
        %254 = sbr.rel (%p252) target = $region16
      $region15: #{global_context_forward.1} parent=11 // pred_region
        _
      $region16: #{global_context_forward.1} parent=11 // pred_fallthru
        _
      // Predicated region
      $region17: #{global_context_forward.1} parent=11 // pred_check
        %p255 = pneg %p85
      $region18: #{global_context_forward.1} parent=11 // pred_check_branch
        %257 = sbr.rel (%p255) target = $region20
      $region19: #{global_context_forward.1} parent=11 // pred_region
        _
      $region20: #{global_context_forward.1} parent=11 // pred_fallthru
        _
      // Predicated region
      $region21: #{global_context_forward.1} parent=11 // pred_check
        %p258 = pneg %p106
      $region22: #{global_context_forward.1} parent=11 // pred_check_branch
        %260 = sbr.rel (%p258) target = $region24
      $region23: #{global_context_forward.1} parent=11 // pred_region
        _
      $region24: #{global_context_forward.1} parent=11 // pred_fallthru
        _
      // Predicated region
      $region25: #{global_context_forward.1} parent=11 // pred_check
        %p261 = pneg %p127
      $region26: #{global_context_forward.1} parent=11 // pred_check_branch
        %263 = sbr.rel (%p261) target = $region28
      $region27: #{global_context_forward.1} parent=11 // pred_region
        _
      $region28: #{global_context_forward.1} parent=11 // pred_fallthru
        _
      // Predicated region
      $region29: #{global_context_forward.1} parent=11 // pred_check
        %p264 = pneg %p148
      $region30: #{global_context_forward.1} parent=11 // pred_check_branch
        %266 = sbr.rel (%p264) target = $region32
      $region31: #{global_context_forward.1} parent=11 // pred_region
        _
      $region32: #{global_context_forward.1} parent=11 // pred_fallthru
        _
      // Predicated region
      $region33: #{global_context_forward.1} parent=11 // pred_check
        %p267 = pneg %p169
      $region34: #{global_context_forward.1} parent=11 // pred_check_branch
        %269 = sbr.rel (%p267) target = $region36
      $region35: #{global_context_forward.1} parent=11 // pred_region
        _
      $region36: #{global_context_forward.1} parent=11 // pred_fallthru
        _
      // Predicated region
      $region37: #{global_context_forward.1} parent=11 // pred_check
        %p270 = pneg %p190
      $region38: #{global_context_forward.1} parent=11 // pred_check_branch
        %272 = sbr.rel (%p270) target = $region40
      $region39: #{global_context_forward.1} parent=11 // pred_region
        _
      $region40: #{global_context_forward.1} parent=11 // pred_fallthru
        _
      // Predicated region
      $region41: #{global_context_forward.1} parent=11 // pred_check
        %p273 = pneg %p211
      $region42: #{global_context_forward.1} parent=11 // pred_check_branch
        %275 = sbr.rel (%p273) target = $region44
      $region43: #{global_context_forward.1} parent=11 // pred_region
        _
      $region44: #{global_context_forward.1} parent=11 // pred_fallthru
        _
    $region12: #{global_context_forward.1} parent=5 // pred_fallthru
      _
    %p276 = scmp.lt.s32.totalorder %s17, 2
    // Predicated region
    $region45: #{global_context_forward.1} parent=5 // pred_check
      %p277 = pneg %p276
    $region46: #{global_context_forward.1} parent=5 // pred_check_branch
      %279 = sbr.rel (%p277) target = $region48
    $region47: #{global_context_forward.1} parent=5 // pred_region
      // Predicated region
      $region49: #{global_context_forward.1} parent=47 // pred_check
        %p280 = pneg %p37
      $region50: #{global_context_forward.1} parent=47 // pred_check_branch
        %282 = sbr.rel (%p280) target = $region52
      $region51: #{global_context_forward.1} parent=47 // pred_region
        %p283 = scmp.lt.s32.totalorder %s17, 1
        %s284 = scalar_select %p283, %s17, 1
        %s285 = smul.addr %s284, 16
        %s286 = smul.addr %s285, 8
        %s287 = scalar_lea.vmem %s0, %s286
      $region52: #{global_context_forward.1} parent=47 // pred_fallthru
        _
    $region48: #{global_context_forward.1} parent=5 // pred_fallthru
      _
    %p288 = scmp.le.s32.totalorder 1, %s17
    %p289 = scmp.lt.s32.totalorder %s17, 3
    %p290 = pnand %p288, %p289
    %p291 = pneg %p290
    // Predicated region
    $region53: #{global_context_forward.1} parent=5 // pred_check
      _
    $region54: #{global_context_forward.1} parent=5 // pred_check_branch
      %293 = sbr.rel (%p290) target = $region56
    $region55: #{global_context_forward.1} parent=5 // pred_region
      %s294 = ssub.s32 %s17, 1
      %p295 = scmp.lt.s32.totalorder %s22, 1
      %s296 = scalar_select %p295, %s22, 1
      %s297 = smul.addr %s296, 16
      %s298 = smul.addr %s297, 8
      %s299 = scalar_lea.vmem %s0, %s298
      %p300 = pneg %p43
      %p301 = pneg %p40
      %p302 = pneg %p64
      %p303 = pneg %p61
      %p304 = pneg %p85
      %p305 = pneg %p82
      %p306 = pneg %p106
      %p307 = pneg %p103
      %p308 = pneg %p127
      %p309 = pneg %p124
      %p310 = pneg %p148
      %p311 = pneg %p145
      %p312 = pneg %p169
      %p313 = pneg %p166
      %p314 = pneg %p190
      %p315 = pneg %p187
      %p316 = pneg %p211
      %p317 = pneg %p208
      %p318 = pneg %p237
      %p319 = pneg %p234
      %p320 = scmp.lt.s32.totalorder %s22, 1
      %s321 = scalar_select %p320, %s22, 1
      %s322 = smul.addr %s321, 16
      %s323 = smul.addr %s322, 8
      %s324 = scalar_lea.vmem %s9, %s323
      %p325 = scmp.lt.s32.totalorder %s22, 1
      %s326 = scalar_select %p325, %s22, 1
      %s327 = smul.addr %s326, 16
      %s328 = smul.addr %s327, 8
      %s329 = scalar_lea.vmem %s0, %s328
      %p330 = scmp.lt.s32.totalorder %s22, 1
      %s331 = scalar_select %p330, %s22, 1
      %s332 = smul.addr %s331, 16
      %s333 = smul.addr %s332, 8
      %s334 = scalar_lea.vmem %s9, %s333
      %v335 = vld [vmem:[%s329] sm:$0xff]
      %v336 = vld [vmem:[%s329 + $0x8] sm:$0xff]
      %v337 = vld [vmem:[%s329 + $0x10] sm:$0xff]
      %v338 = vld [vmem:[%s329 + $0x18] sm:$0xff]
      %v339 = vld [vmem:[%s329 + $0x20] sm:$0xff]
      %v340 = vld [vmem:[%s329 + $0x28] sm:$0xff]
      %v341 = vld [vmem:[%s329 + $0x30] sm:$0xff]
      %v342 = vld [vmem:[%s329 + $0x38] sm:$0xff]
      %v343 = vld [vmem:[%s329 + $0x40] sm:$0xff]
      %v344 = vld [vmem:[%s329 + $0x48] sm:$0xff]
      %v345 = vld [vmem:[%s329 + $0x50] sm:$0xff]
      %v346 = vld [vmem:[%s329 + $0x58] sm:$0xff]
      %v347 = vld [vmem:[%s329 + $0x60] sm:$0xff]
      %v348 = vld [vmem:[%s329 + $0x68] sm:$0xff]
      %v349 = vld [vmem:[%s329 + $0x70] sm:$0xff]
      %v350 = vld [vmem:[%s329 + $0x78] sm:$0xff]
      %v351 = vld [vmem:[%s1] sm:$0x1]
      %v352 = vld [vmem:[#allocation2] sm:$0x1]
      %354 = vset.pattern.permute.xlu0 0
      %355 = vperm.xlu0 %354, %v352
      %v356 = vpop.permute.xlu0 %355
      %v358 = vperm.slane %v356, 0
      %vm359 = vcmask 523264
      %v361 = vsel %vm359, %v351, 0
      %363 = vmatpush.msra.mxu0 0.0
      %364 = vmatpush.msra.mxu0 0.0
      %365 = vmatpush.msra.mxu0 0.0
      %366 = vmatpush.msra.mxu0 0.0
      %367 = vmatpush.msra.mxu0 0.0
      %368 = vmatpush.msra.mxu0 0.0
      %369 = vmatpush.msra.mxu0 0.0
      %370 = vmatpush.msra.mxu0 0.0
      %371 = vmatpush.msra.mxu0 %v349
      %372 = vmatpush.msra.mxu0 %v347
      %373 = vmatpush.msra.mxu0 %v345
      %374 = vmatpush.msra.mxu0 %v343
      %375 = vmatpush.msra.mxu0 %v341
      %376 = vmatpush.msra.mxu0 %v339
      %377 = vmatpush.msra.mxu0 %v337
      %378 = vmatpush.msra.mxu0 %v335
      %379 = vmatmul.f32.gmra.mxu0 %v361
      %v380 = vpop.f32.mrf.mxu0
      %v381 = vadd.f32 %v358, %v380
      %382 = vdwg.mxu0
      %383 = vmatpush.msra.mxu0 0.0
      %384 = vmatpush.msra.mxu0 0.0
      %385 = vmatpush.msra.mxu0 0.0
      %386 = vmatpush.msra.mxu0 0.0
      %387 = vmatpush.msra.mxu0 0.0
      %388 = vmatpush.msra.mxu0 0.0
      %389 = vmatpush.msra.mxu0 0.0
      %390 = vmatpush.msra.mxu0 0.0
      %391 = vmatpush.msra.mxu0 %v350
      %392 = vmatpush.msra.mxu0 %v348
      %393 = vmatpush.msra.mxu0 %v346
      %394 = vmatpush.msra.mxu0 %v344
      %395 = vmatpush.msra.mxu0 %v342
      %396 = vmatpush.msra.mxu0 %v340
      %397 = vmatpush.msra.mxu0 %v338
      %398 = vmatpush.msra.mxu0 %v336
      %399 = vmatmul.f32.gmra.mxu0 %v361
      %v400 = vpop.f32.mrf.mxu0
      %v401 = vadd.f32 %v358, %v400
      %402 = vdwg.mxu0
      %vm403 = vcmask 1040384
      %v404 = vsel %vm403, %v381, -inf
      %v405 = vsel %vm403, %v401, -inf
      %v406 = vmax.f32 %v404, %v405
      %407 = vmax.xlane.f32.xlu0 %v406
      %v408 = vpop.xlane.xlu0 %407
      %v409 = vsub.f32 %v381, %v408
      %v410 = vsub.f32 %v401, %v408
      %v411 = vmul.f32 %v409, 1.442695
      %v412 = vpow.pop %v411
      %v413 = vmul.f32 %v410, 1.442695
      %v414 = vpow.pop %v413
      %v415 = vsel %vm403, %v412, 0.0
      %v416 = vsel %vm403, %v414, 0.0
      %v417 = vadd.f32 %v415, %v416
      %418 = vadd.xlane.f32.xlu0 %v417
      %v419 = vpop.xlane.xlu0 %418
      %v420 = vperm.slane %v412, 0
      %v421 = vperm.slane %v414, 0
      %v422 = vmul.f32 %v335, %v420
      %v423 = vmul.f32 %v336, %v421
      %v424 = vmul.f32 %v337, %v420
      %v425 = vmul.f32 %v338, %v421
      %v426 = vmul.f32 %v339, %v420
      %v427 = vmul.f32 %v340, %v421
      %v428 = vmul.f32 %v341, %v420
      %v429 = vmul.f32 %v342, %v421
      %v430 = vmul.f32 %v343, %v420
      %v431 = vmul.f32 %v344, %v421
      %v432 = vmul.f32 %v345, %v420
      %v433 = vmul.f32 %v346, %v421
      %v434 = vmul.f32 %v347, %v420
      %v435 = vmul.f32 %v348, %v421
      %v436 = vmul.f32 %v349, %v420
      %v437 = vmul.f32 %v350, %v421
      %v438 = vadd.f32 %v422, %v423
      %439 = vadd.xlane.f32.xlu0 %v438
      %v440 = vpop.xlane.xlu0 %439
      %v441 = vadd.f32 %v424, %v425
      %442 = vadd.xlane.f32.xlu0 %v441
      %v443 = vpop.xlane.xlu0 %442
      %v444 = vadd.f32 %v426, %v427
      %445 = vadd.xlane.f32.xlu0 %v444
      %v446 = vpop.xlane.xlu0 %445
      %v447 = vadd.f32 %v428, %v429
      %448 = vadd.xlane.f32.xlu0 %v447
      %v449 = vpop.xlane.xlu0 %448
      %v450 = vadd.f32 %v430, %v431
      %451 = vadd.xlane.f32.xlu0 %v450
      %v452 = vpop.xlane.xlu0 %451
      %v453 = vadd.f32 %v432, %v433
      %454 = vadd.xlane.f32.xlu0 %v453
      %v455 = vpop.xlane.xlu0 %454
      %v456 = vadd.f32 %v434, %v435
      %457 = vadd.xlane.f32.xlu0 %v456
      %v458 = vpop.xlane.xlu0 %457
      %v459 = vadd.f32 %v436, %v437
      %460 = vadd.xlane.f32.xlu0 %v459
      %v461 = vpop.xlane.xlu0 %460
      %v462 = vperm.slane %v419, 0
      %v463 = vrcp.pop %v462
      %v464 = vmul.f32 %v462, %v463
      %v465 = vsub.f32 1.0, %v464
      %v466 = vmul.f32 %v463, %v465
      %v467 = vadd.f32 %v463, %v466
      %vm468 = vweird.f32 %v462
      %vm469 = vweird.f32 %v463
      %vm470 = vmor %vm468, %vm469
      %v471 = vsel %vm470, %v463, %v467
      %v472 = vand.u32 2147483647, %v462
      %vm473 = vcmp.eq.f32.partialorder %v472, 8.507059e+37
      %v474 = vand.u32 %v462, 2147483648
      %v475 = vor.u32 1.1754944e-38, %v474
      %v476 = vsel %vm473, %v475, %v471
      %v477 = vmul.f32 %v440, %v476
      %v478 = vmul.f32 %v443, %v476
      %v479 = vmul.f32 %v446, %v476
      %v480 = vmul.f32 %v449, %v476
      %v481 = vmul.f32 %v452, %v476
      %v482 = vmul.f32 %v455, %v476
      %v483 = vmul.f32 %v458, %v476
      %v484 = vmul.f32 %v461, %v476
      %v485 = vld [vmem:[%s3] sm:$0xff]
      %v486 = vld [vmem:[%s4] sm:$0xff]
      %v487 = vld [vmem:[%s5] sm:$0xff]
      %v488 = vld [vmem:[%s6] sm:$0xff]
      %v489 = vld [vmem:[%s7] sm:$0xff]
      %v490 = vld [vmem:[%s7 + $0x8] sm:$0xff]
      %v491 = vld [vmem:[%s7 + $0x10] sm:$0xff]
      %v492 = vld [vmem:[%s7 + $0x18] sm:$0xff]
      %v493 = vld [vmem:[%s7 + $0x20] sm:$0xff]
      %v494 = vld [vmem:[%s7 + $0x28] sm:$0xff]
      %v495 = vld [vmem:[%s7 + $0x30] sm:$0xff]
      %v496 = vld [vmem:[%s7 + $0x38] sm:$0xff]
      %v497 = vld [vmem:[%s8] sm:$0xff]
      %v498 = vld [vmem:[%s8 + $0x8] sm:$0xff]
      %v499 = vld [vmem:[%s8 + $0x10] sm:$0xff]
      %v500 = vld [vmem:[%s8 + $0x18] sm:$0xff]
      %v501 = vld [vmem:[%s8 + $0x20] sm:$0xff]
      %v502 = vld [vmem:[%s8 + $0x28] sm:$0xff]
      %v503 = vld [vmem:[%s8 + $0x30] sm:$0xff]
      %v504 = vld [vmem:[%s8 + $0x38] sm:$0xff]
      %v506 = vsel %vm359, %v485, 0
      %508 = vmatpush.msra.mxu0 0.0
      %509 = vmatpush.msra.mxu0 0.0
      %510 = vmatpush.msra.mxu0 0.0
      %511 = vmatpush.msra.mxu0 0.0
      %512 = vmatpush.msra.mxu0 0.0
      %513 = vmatpush.msra.mxu0 0.0
      %514 = vmatpush.msra.mxu0 0.0
      %515 = vmatpush.msra.mxu0 0.0
      %516 = vmatpush.msra.mxu0 %v484
      %517 = vmatpush.msra.mxu0 %v483
      %518 = vmatpush.msra.mxu0 %v482
      %519 = vmatpush.msra.mxu0 %v481
      %520 = vmatpush.msra.mxu0 %v480
      %521 = vmatpush.msra.mxu0 %v479
      %522 = vmatpush.msra.mxu0 %v478
      %523 = vmatpush.msra.mxu0 %v477
      %524 = vmatmul.f32.gmra.mxu0 %v506
      %v525 = vpop.f32.mrf.mxu0
      %v526 = vadd.f32 %v486, %v525
      %527 = vdwg.mxu0
      %vm528 = vcmask 7168
      %v529 = vsel %vm528, %v526, 0.0
      %v530 = vrot.slane %v529, 4
      %v531 = vadd.f32 %v529, %v530
      %v532 = vrot.slane %v531, 2
      %v533 = vadd.f32 %v531, %v532
      %v534 = vrot.slane %v533, 1
      %v535 = vadd.f32 %v533, %v534
      %v536 = vrcp.pop 8.0
      %v537 = vmul.f32 8.0, %v536
      %v538 = vsub.f32 1.0, %v537
      %v539 = vmul.f32 %v536, %v538
      %v540 = vadd.f32 %v536, %v539
      %vm541 = vweird.f32 %v536
      %v542 = vsel %vm541, %v536, %v540
      %v543 = vmul.f32 %v535, %v542
      %v544 = vsub.f32 %v526, %v543
      %v545 = vmul.f32 %v544, %v544
      %v546 = vsel %vm528, %v545, 0.0
      %v547 = vrot.slane %v546, 4
      %v548 = vadd.f32 %v546, %v547
      %v549 = vrot.slane %v548, 2
      %v550 = vadd.f32 %v548, %v549
      %v551 = vrot.slane %v550, 1
      %v552 = vadd.f32 %v550, %v551
      %v553 = vmul.f32 %v552, %v542
      %v554 = vadd.f32 %v553, 1e-05
      %v555 = vrsqrt.pop %v554
      %v556 = vmul.f32 %v555, %v554
      %v557 = vmul.f32 %v556, %v555
      %v558 = vmul.f32 0.5, %v557
      %v559 = vsub.f32 1.5, %v558
      %v560 = vmul.f32 %v555, %v559
      %vm561 = vweird.f32 %v554
      %vm562 = vweird.f32 %v555
      %vm563 = vmor %vm561, %vm562
      %v564 = vsel %vm563, %v555, %v560
      %v565 = vmul.f32 %v544, %v564
      %v566 = vmul.f32 %v565, %v487
      %v567 = vadd.f32 %v566, %v488
      %v568 = vmax.f32 %v567, 0.0
      %vm569 = vcmask 64512
      %v571 = vsel %vm569, %v489, 0
      %v574 = vsel %vm569, %v490, 0
      %v577 = vsel %vm569, %v491, 0
      %v580 = vsel %vm569, %v492, 0
      %v583 = vsel %vm569, %v493, 0
      %v586 = vsel %vm569, %v494, 0
      %v589 = vsel %vm569, %v495, 0
      %v592 = vsel %vm569, %v496, 0
      %594 = vmatpush.msra.mxu0 0.0
      %595 = vmatpush.msra.mxu0 0.0
      %596 = vmatpush.msra.mxu0 0.0
      %597 = vmatpush.msra.mxu0 0.0
      %598 = vmatpush.msra.mxu0 0.0
      %599 = vmatpush.msra.mxu0 0.0
      %600 = vmatpush.msra.mxu0 0.0
      %601 = vmatpush.msra.mxu0 0.0
      %602 = vmatpush.msra.mxu0 0.0
      %603 = vmatpush.msra.mxu0 0.0
      %604 = vmatpush.msra.mxu0 0.0
      %605 = vmatpush.msra.mxu0 0.0
      %606 = vmatpush.msra.mxu0 0.0
      %607 = vmatpush.msra.mxu0 0.0
      %608 = vmatpush.msra.mxu0 0.0
      %609 = vmatpush.msra.mxu0 %v568
      %610 = vmatmul.f32.gmra.mxu0 %v571
      %v611 = vpop.f32.mrf.mxu0
      %v612 = vadd.f32 %v497, %v611
      %613 = vmatmul.f32.gmra.mxu0 %v574
      %v614 = vpop.f32.mrf.mxu0
      %v615 = vadd.f32 %v498, %v614
      %616 = vmatmul.f32.gmra.mxu0 %v577
      %v617 = vpop.f32.mrf.mxu0
      %v618 = vadd.f32 %v499, %v617
      %619 = vmatmul.f32.gmra.mxu0 %v580
      %v620 = vpop.f32.mrf.mxu0
      %v621 = vadd.f32 %v500, %v620
      %622 = vmatmul.f32.gmra.mxu0 %v583
      %v623 = vpop.f32.mrf.mxu0
      %v624 = vadd.f32 %v501, %v623
      %625 = vmatmul.f32.gmra.mxu0 %v586
      %v626 = vpop.f32.mrf.mxu0
      %v627 = vadd.f32 %v502, %v626
      %628 = vmatmul.f32.gmra.mxu0 %v589
      %v629 = vpop.f32.mrf.mxu0
      %v630 = vadd.f32 %v503, %v629
      %631 = vmatmul.f32.gmra.mxu0 %v592
      %v632 = vpop.f32.mrf.mxu0
      %v633 = vadd.f32 %v504, %v632
      %634 = vdwg.mxu0
      %v635 = vxor.u32 %v612, 2147483648
      %v636 = vxor.u32 %v615, 2147483648
      %v637 = vxor.u32 %v618, 2147483648
      %v638 = vxor.u32 %v621, 2147483648
      %v639 = vxor.u32 %v624, 2147483648
      %v640 = vxor.u32 %v627, 2147483648
      %v641 = vxor.u32 %v630, 2147483648
      %v642 = vxor.u32 %v633, 2147483648
      %v643 = vmul.f32 %v635, 1.442695
      %v644 = vpow.pop %v643
      %v645 = vmul.f32 %v636, 1.442695
      %v646 = vpow.pop %v645
      %v647 = vmul.f32 %v637, 1.442695
      %v648 = vpow.pop %v647
      %v649 = vmul.f32 %v638, 1.442695
      %v650 = vpow.pop %v649
      %v651 = vmul.f32 %v639, 1.442695
      %v652 = vpow.pop %v651
      %v653 = vmul.f32 %v640, 1.442695
      %v654 = vpow.pop %v653
      %v655 = vmul.f32 %v641, 1.442695
      %v656 = vpow.pop %v655
      %v657 = vmul.f32 %v642, 1.442695
      %v658 = vpow.pop %v657
      %v659 = vadd.f32 %v644, 1.0
      %v660 = vadd.f32 %v646, 1.0
      %v661 = vadd.f32 %v648, 1.0
      %v662 = vadd.f32 %v650, 1.0
      %v663 = vadd.f32 %v652, 1.0
      %v664 = vadd.f32 %v654, 1.0
      %v665 = vadd.f32 %v656, 1.0
      %v666 = vadd.f32 %v658, 1.0
      %v667 = vrcp.pop %v659
      %v668 = vmul.f32 %v659, %v667
      %v669 = vsub.f32 1.0, %v668
      %v670 = vmul.f32 %v667, %v669
      %v671 = vadd.f32 %v667, %v670
      %vm672 = vweird.f32 %v659
      %vm673 = vweird.f32 %v667
      %vm674 = vmor %vm672, %vm673
      %v675 = vsel %vm674, %v667, %v671
      %v676 = vand.u32 2147483647, %v659
      %vm677 = vcmp.eq.f32.partialorder %v676, 8.507059e+37
      %v678 = vand.u32 %v659, 2147483648
      %v679 = vor.u32 1.1754944e-38, %v678
      %v680 = vsel %vm677, %v679, %v675
      %v681 = vmul.f32 1.0, %v680
      %v682 = vrcp.pop %v660
      %v683 = vmul.f32 %v660, %v682
      %v684 = vsub.f32 1.0, %v683
      %v685 = vmul.f32 %v682, %v684
      %v686 = vadd.f32 %v682, %v685
      %vm687 = vweird.f32 %v660
      %vm688 = vweird.f32 %v682
      %vm689 = vmor %vm687, %vm688
      %v690 = vsel %vm689, %v682, %v686
      %v691 = vand.u32 2147483647, %v660
      %vm692 = vcmp.eq.f32.partialorder %v691, 8.507059e+37
      %v693 = vand.u32 %v660, 2147483648
      %v694 = vor.u32 1.1754944e-38, %v693
      %v695 = vsel %vm692, %v694, %v690
      %v696 = vmul.f32 1.0, %v695
      %v697 = vrcp.pop %v661
      %v698 = vmul.f32 %v661, %v697
      %v699 = vsub.f32 1.0, %v698
      %v700 = vmul.f32 %v697, %v699
      %v701 = vadd.f32 %v697, %v700
      %vm702 = vweird.f32 %v661
      %vm703 = vweird.f32 %v697
      %vm704 = vmor %vm702, %vm703
      %v705 = vsel %vm704, %v697, %v701
      %v706 = vand.u32 2147483647, %v661
      %vm707 = vcmp.eq.f32.partialorder %v706, 8.507059e+37
      %v708 = vand.u32 %v661, 2147483648
      %v709 = vor.u32 1.1754944e-38, %v708
      %v710 = vsel %vm707, %v709, %v705
      %v711 = vmul.f32 1.0, %v710
      %v712 = vrcp.pop %v662
      %v713 = vmul.f32 %v662, %v712
      %v714 = vsub.f32 1.0, %v713
      %v715 = vmul.f32 %v712, %v714
      %v716 = vadd.f32 %v712, %v715
      %vm717 = vweird.f32 %v662
      %vm718 = vweird.f32 %v712
      %vm719 = vmor %vm717, %vm718
      %v720 = vsel %vm719, %v712, %v716
      %v721 = vand.u32 2147483647, %v662
      %vm722 = vcmp.eq.f32.partialorder %v721, 8.507059e+37
      %v723 = vand.u32 %v662, 2147483648
      %v724 = vor.u32 1.1754944e-38, %v723
      %v725 = vsel %vm722, %v724, %v720
      %v726 = vmul.f32 1.0, %v725
      %v727 = vrcp.pop %v663
      %v728 = vmul.f32 %v663, %v727
      %v729 = vsub.f32 1.0, %v728
      %v730 = vmul.f32 %v727, %v729
      %v731 = vadd.f32 %v727, %v730
      %vm732 = vweird.f32 %v663
      %vm733 = vweird.f32 %v727
      %vm734 = vmor %vm732, %vm733
      %v735 = vsel %vm734, %v727, %v731
      %v736 = vand.u32 2147483647, %v663
      %vm737 = vcmp.eq.f32.partialorder %v736, 8.507059e+37
      %v738 = vand.u32 %v663, 2147483648
      %v739 = vor.u32 1.1754944e-38, %v738
      %v740 = vsel %vm737, %v739, %v735
      %v741 = vmul.f32 1.0, %v740
      %v742 = vrcp.pop %v664
      %v743 = vmul.f32 %v664, %v742
      %v744 = vsub.f32 1.0, %v743
      %v745 = vmul.f32 %v742, %v744
      %v746 = vadd.f32 %v742, %v745
      %vm747 = vweird.f32 %v664
      %vm748 = vweird.f32 %v742
      %vm749 = vmor %vm747, %vm748
      %v750 = vsel %vm749, %v742, %v746
      %v751 = vand.u32 2147483647, %v664
      %vm752 = vcmp.eq.f32.partialorder %v751, 8.507059e+37
      %v753 = vand.u32 %v664, 2147483648
      %v754 = vor.u32 1.1754944e-38, %v753
      %v755 = vsel %vm752, %v754, %v750
      %v756 = vmul.f32 1.0, %v755
      %v757 = vrcp.pop %v665
      %v758 = vmul.f32 %v665, %v757
      %v759 = vsub.f32 1.0, %v758
      %v760 = vmul.f32 %v757, %v759
      %v761 = vadd.f32 %v757, %v760
      %vm762 = vweird.f32 %v665
      %vm763 = vweird.f32 %v757
      %vm764 = vmor %vm762, %vm763
      %v765 = vsel %vm764, %v757, %v761
      %v766 = vand.u32 2147483647, %v665
      %vm767 = vcmp.eq.f32.partialorder %v766, 8.507059e+37
      %v768 = vand.u32 %v665, 2147483648
      %v769 = vor.u32 1.1754944e-38, %v768
      %v770 = vsel %vm767, %v769, %v765
      %v771 = vmul.f32 1.0, %v770
      %v772 = vrcp.pop %v666
      %v773 = vmul.f32 %v666, %v772
      %v774 = vsub.f32 1.0, %v773
      %v775 = vmul.f32 %v772, %v774
      %v776 = vadd.f32 %v772, %v775
      %vm777 = vweird.f32 %v666
      %vm778 = vweird.f32 %v772
      %vm779 = vmor %vm777, %vm778
      %v780 = vsel %vm779, %v772, %v776
      %v781 = vand.u32 2147483647, %v666
      %vm782 = vcmp.eq.f32.partialorder %v781, 8.507059e+37
      %v783 = vand.u32 %v666, 2147483648
      %v784 = vor.u32 1.1754944e-38, %v783
      %v785 = vsel %vm782, %v784, %v780
      %v786 = vmul.f32 1.0, %v785
      %788 = vset.pattern.permute.xlu0 0
      %789 = vperm.xlu0 %788, %v681
      %v790 = vpop.permute.xlu0 %789
      %793 = vset.pattern.permute.xlu0 0
      %794 = vperm.xlu0 %793, %v696
      %v795 = vpop.permute.xlu0 %794
      %798 = vset.pattern.permute.xlu0 0
      %799 = vperm.xlu0 %798, %v711
      %v800 = vpop.permute.xlu0 %799
      %803 = vset.pattern.permute.xlu0 0
      %804 = vperm.xlu0 %803, %v726
      %v805 = vpop.permute.xlu0 %804
      %808 = vset.pattern.permute.xlu0 0
      %809 = vperm.xlu0 %808, %v741
      %v810 = vpop.permute.xlu0 %809
      %813 = vset.pattern.permute.xlu0 0
      %814 = vperm.xlu0 %813, %v756
      %v815 = vpop.permute.xlu0 %814
      %818 = vset.pattern.permute.xlu0 0
      %819 = vperm.xlu0 %818, %v771
      %v820 = vpop.permute.xlu0 %819
      %823 = vset.pattern.permute.xlu0 0
      %824 = vperm.xlu0 %823, %v786
      %v825 = vpop.permute.xlu0 %824
      %v827 = vmul.f32 %v335, %v790
      %v828 = vmul.f32 %v336, %v790
      %v829 = vmul.f32 %v337, %v795
      %v830 = vmul.f32 %v338, %v795
      %v831 = vmul.f32 %v339, %v800
      %v832 = vmul.f32 %v340, %v800
      %v833 = vmul.f32 %v341, %v805
      %v834 = vmul.f32 %v342, %v805
      %v835 = vmul.f32 %v343, %v810
      %v836 = vmul.f32 %v344, %v810
      %v837 = vmul.f32 %v345, %v815
      %v838 = vmul.f32 %v346, %v815
      %v839 = vmul.f32 %v347, %v820
      %v840 = vmul.f32 %v348, %v820
      %v841 = vmul.f32 %v349, %v825
      %v842 = vmul.f32 %v350, %v825
      %843 = vst [vmem:[%s334] sm:$0xff] %v827
      %844 = vst [vmem:[%s334 + $0x8] sm:$0xff] %v828
      %845 = vst [vmem:[%s334 + $0x10] sm:$0xff] %v829
      %846 = vst [vmem:[%s334 + $0x18] sm:$0xff] %v830
      %847 = vst [vmem:[%s334 + $0x20] sm:$0xff] %v831
      %848 = vst [vmem:[%s334 + $0x28] sm:$0xff] %v832
      %849 = vst [vmem:[%s334 + $0x30] sm:$0xff] %v833
      %850 = vst [vmem:[%s334 + $0x38] sm:$0xff] %v834
      %851 = vst [vmem:[%s334 + $0x40] sm:$0xff] %v835
      %852 = vst [vmem:[%s334 + $0x48] sm:$0xff] %v836
      %853 = vst [vmem:[%s334 + $0x50] sm:$0xff] %v837
      %854 = vst [vmem:[%s334 + $0x58] sm:$0xff] %v838
      %855 = vst [vmem:[%s334 + $0x60] sm:$0xff] %v839
      %856 = vst [vmem:[%s334 + $0x68] sm:$0xff] %v840
      %857 = vst [vmem:[%s334 + $0x70] sm:$0xff] %v841
      %858 = vst [vmem:[%s334 + $0x78] sm:$0xff] %v842
      %p859 = scmp.lt.s32.totalorder %s22, 1
      %s860 = scalar_select %p859, %s22, 1
      %s861 = smul.addr %s860, 16
      %s862 = smul.addr %s861, 8
      %s863 = scalar_lea.vmem %s9, %s862
      // Predicated region
      $region57: #{global_context_forward.1} parent=55 // pred_check
        %p864 = pneg %p234
      $region58: #{global_context_forward.1} parent=55 // pred_check_branch
        %866 = sbr.rel (%p864) target = $region60
      $region59: #{global_context_forward.1} parent=55 // pred_region
        _
      $region60: #{global_context_forward.1} parent=55 // pred_fallthru
        _
    $region56: #{global_context_forward.1} parent=5 // pred_fallthru
      _
    %p867 = scmp.le.s32.totalorder 2, %s17
    // Predicated region
    $region61: #{global_context_forward.1} parent=5 // pred_check
      %p868 = pneg %p867
    $region62: #{global_context_forward.1} parent=5 // pred_check_branch
      %870 = sbr.rel (%p868) target = $region64
    $region63: #{global_context_forward.1} parent=5 // pred_region
      %s871 = ssub.s32 %s17, 2
      // Predicated region
      $region65: #{global_context_forward.1} parent=63 // pred_check
        %p872 = pneg %p240
      $region66: #{global_context_forward.1} parent=63 // pred_check_branch
        %874 = sbr.rel (%p872) target = $region68
      $region67: #{global_context_forward.1} parent=63 // pred_region
        %p875 = scmp.lt.s32.totalorder %s23, 1
        %s876 = scalar_select %p875, %s23, 1
        %s877 = smul.addr %s876, 16
        %s878 = smul.addr %s877, 8
        %s879 = scalar_lea.vmem %s9, %s878
      $region68: #{global_context_forward.1} parent=63 // pred_fallthru
        _
    $region64: #{global_context_forward.1} parent=5 // pred_fallthru
      _
  $region6: #{global_context_forward.1} parent=0 // loop_footer
    %s21 = sadd.s32 1, %s17
  $region7: #{global_context_forward.1} parent=0 // loop_footer_branch
    %16 = sbr.rel target = $region3
  $region8: #{global_context_forward.1} parent=0 // loop_exit
    _

</llo_original>
